<compile_context>
chip_gen: v7x
topology: tpu7x:2x2x1
jax: 0.10.0
libtpu: 0.0.40
codegen_flags: <defaults>
</compile_context>

<pallas_src>
import functools

import jax
import jax.numpy as jnp
from jax.experimental import pallas as pl
from jax.experimental.pallas import tpu as pltpu


def _logreg_kernel(x_ref, w_ref, vb_ref, out_ref):
    # x_ref:   (tb, S)     input dtype (cast in-kernel; no HBM upcast copy)
    # w_ref:   (1, S)      f32  stimulus half of the linear weight (resident)
    # vb_ref:  (1, 1, tb)  f32  per-row (emb_table @ w_emb)[id] + bias
    # out_ref: (1, 1, tb)  f32  spike probabilities, lane-dense store
    x = x_ref[...].astype(jnp.float32)
    w = w_ref[...]                                  # (1, S) sublane-broadcast
    # VPU multiply + lane reduce; avoids a width-1-output MXU matvec.
    r = jnp.sum(x * w, axis=-1)                     # (tb,)
    logits = r[None, None, :] + vb_ref[...]         # (1, 1, tb) lane-dense
    out_ref[...] = jax.nn.sigmoid(logits)


def _round_up(a, m):
    return (a + m - 1) // m * m


@functools.partial(jax.jit, static_argnames=("x_buffer_bytes",))
def neuron_embedding_logreg(x_stim, neuron_ids, emb_table, weight, bias, *,
                            x_buffer_bytes=16 * 1024 * 1024):
    """
    x_stim:     (B, S) float32/bfloat16
    neuron_ids: (B,)   int
    emb_table:  (N, E) float   (nn.Embedding weight)
    weight:     (S+E,) float   (nn.Linear weight, flattened)
    bias:       scalar float   (nn.Linear bias)
    returns:    (B,)   float32 spike probabilities
    """
    B, S = x_stim.shape
    emb_table = emb_table.astype(jnp.float32)
    weight = weight.astype(jnp.float32)

    w_stim = weight[:S].reshape(1, S)
    w_emb = weight[S:]

    # Fold the embedding through the linear layer (exact in f32 up to
    # summation order): per-neuron scalar logit contribution, gathered per row.
    # TODO(synk): out-of-range neuron_ids are clamped by JAX gather semantics;
    # PyTorch nn.Embedding would raise instead.
    v = emb_table @ w_emb                                            # (N,)
    vb = v[neuron_ids.astype(jnp.int32)] + jnp.asarray(bias, jnp.float32)

    # --- Batch tile from a per-buffer VMEM byte budget ----------------------
    # A (tb, S) block occupies tb * round_up(S, 128) * itemsize bytes in VMEM
    # (lane padding!).  16 MiB/buffer * 2 buffers + small vb/out/w stays well
    # under the 48 MiB scoped limit, which fits v7x's 64 MiB physical VMEM.
    s_pad = _round_up(max(S, 1), 128)
    itemsize = jnp.dtype(x_stim.dtype).itemsize
    tb = max(128, (x_buffer_bytes // (s_pad * itemsize)) // 128 * 128)
    # Cap at ~half the batch (rounded to 128) so 2-TC chips get >= 2 tiles.
    tb = min(tb, max(128, _round_up(pl.cdiv(B, 2), 128)))
    g = pl.cdiv(B, tb)

    # X is streamed unpadded for multi-tile batches (no full-array HBM copy);
    # only when a single tile covers everything (B <= 128) do we pad X, which
    # costs < 128 rows.  The tiny vb vector is always padded to g * tb.
    if B < tb:
        x_in = jnp.pad(x_stim, ((0, tb - B), (0, 0)))
    else:
        x_in = x_stim
    vb_pad = jnp.pad(vb, (0, g * tb - B)).reshape(g, 1, tb)

    out = pl.pallas_call(
        _logreg_kernel,
        out_shape=jax.ShapeDtypeStruct((g, 1, tb), jnp.float32),
        grid=(g,),
        in_specs=[
            pl.BlockSpec((tb, S), lambda i: (i, 0)),        # x batch tile
            pl.BlockSpec((1, S), lambda i: (0, 0)),         # w_stim (resident)
            pl.BlockSpec((1, 1, tb), lambda i: (i, 0, 0)),  # v[id] + bias tile
        ],
        out_specs=pl.BlockSpec((1, 1, tb), lambda i: (i, 0, 0)),
        compiler_params=pltpu.CompilerParams(
            dimension_semantics=("parallel",),   # shard batch tiles across TCs
            vmem_limit_bytes=48 * 1024 * 1024,   # safe on v7x (64 MiB physical)
        ),
    )(x_in, w_stim, vb_pad)

    return out.reshape(g * tb)[:B]


if __name__ == "__main__":
    # Small synthetic setup consistent with the module's __init__.
    batch = 8
    stimulus_dim = 16
    neuron_count = 12
    neuron_embed_dim = 8

    key = jax.random.PRNGKey(0)
    k_emb, k_w, k_b, k_x, k_ids = jax.random.split(key, 5)

    # Deterministic parameter init (mirrors nn.Embedding ~ N(0,1),
    # nn.Linear ~ U(-1/sqrt(fan_in), 1/sqrt(fan_in))).
    fan_in = stimulus_dim + neuron_embed_dim
    bound = 1.0 / (fan_in ** 0.5)
    emb_table = jax.random.normal(k_emb, (neuron_count, neuron_embed_dim),
                                  dtype=jnp.float32)
    weight = jax.random.uniform(k_w, (fan_in,), minval=-bound, maxval=bound,
                                dtype=jnp.float32)
    bias = jax.random.uniform(k_b, (), minval=-bound, maxval=bound,
                              dtype=jnp.float32)

    # Inputs.
    x_stim = jax.random.normal(k_x, (batch, stimulus_dim), dtype=jnp.float32)
    neuron_ids = jax.random.randint(k_ids, (batch,), 0, neuron_count,
                                    dtype=jnp.int32)

    probs = neuron_embedding_logreg(x_stim, neuron_ids, emb_table, weight, bias)
    probs = jax.block_until_ready(probs)

    # Pure-JAX reference (embedding gather + concat + linear + sigmoid).
    e_ref = emb_table[neuron_ids]
    x_cat = jnp.concatenate([x_stim, e_ref], axis=1)
    ref = jax.nn.sigmoid(x_cat @ weight + bias)
    assert probs.shape == (batch,)
    assert jnp.allclose(probs, ref, atol=1e-5, rtol=1e-5)

    print("KERNEL_OK")
</pallas_src>

<mosaic_0001>
module attributes {stable_mosaic.version = 11 : i64} {
  func.func @_logreg_kernel(%arg0: i32, %arg1: memref<128x16xf32, #tpu.memory_space<vmem>>, %arg2: memref<1x16xf32, #tpu.memory_space<vmem>>, %arg3: memref<1x1x128xf32, #tpu.memory_space<vmem>>, %arg4: memref<1x1x128xf32, #tpu.memory_space<vmem>>) attributes {dimension_semantics = [#tpu.dimension_semantics<parallel>], iteration_bounds = array<i64: 1>, scalar_prefetch = 0 : i64, scratch_operands = 0 : i64, tpu.core_type = #tpu.core_type<tc>, window_params = [{transform_indices = @transform_0, window_bounds = array<i64: 128, 16>}, {pipeline_mode = #tpu.pipeline_mode<synchronous>, transform_indices = @transform_1, window_bounds = array<i64: 1, 16>}, {transform_indices = @transform_2, window_bounds = array<i64: 1, 1, 128>}, {transform_indices = @transform_3, window_bounds = array<i64: 1, 1, 128>}]} {
    %c0 = arith.constant 0 : index
    %c0_0 = arith.constant 0 : index
    %0 = vector.load %arg1[%c0, %c0_0] : memref<128x16xf32, #tpu.memory_space<vmem>>, vector<128x16xf32>
    %c0_1 = arith.constant 0 : index
    %c0_2 = arith.constant 0 : index
    %1 = vector.load %arg2[%c0_1, %c0_2] : memref<1x16xf32, #tpu.memory_space<vmem>>, vector<1x16xf32>
    %2 = vector.broadcast %1 : vector<1x16xf32> to vector<128x16xf32>
    %3 = arith.mulf %0, %2 : vector<128x16xf32>
    %cst = arith.constant dense<0.000000e+00> : vector<128xf32>
    %4 = vector.multi_reduction <add>, %3, %cst [1] : vector<128x16xf32> to vector<128xf32>
    %5 = vector.shape_cast %4 : vector<128xf32> to vector<1x1x128xf32>
    %c0_3 = arith.constant 0 : index
    %c0_4 = arith.constant 0 : index
    %c0_5 = arith.constant 0 : index
    %6 = vector.load %arg3[%c0_3, %c0_4, %c0_5] : memref<1x1x128xf32, #tpu.memory_space<vmem>>, vector<1x1x128xf32>
    %7 = arith.addf %5, %6 : vector<1x1x128xf32>
    %8 = arith.negf %7 : vector<1x1x128xf32>
    %9 = math.exp %8 : vector<1x1x128xf32>
    %cst_6 = arith.constant 1.000000e+00 : f32
    %10 = vector.broadcast %cst_6 : f32 to vector<1x1x128xf32>
    %11 = arith.addf %10, %9 : vector<1x1x128xf32>
    %12 = arith.divf %10, %11 : vector<1x1x128xf32>
    %c0_7 = arith.constant 0 : index
    %c0_8 = arith.constant 0 : index
    %c0_9 = arith.constant 0 : index
    %13 = vector.load %arg4[%c0_7, %c0_8, %c0_9] : memref<1x1x128xf32, #tpu.memory_space<vmem>>, vector<1x1x128xf32>
    tpu.vector_store %arg4[%c0_7, %c0_8, %c0_9], %12 {strides = array<i32>} : memref<1x1x128xf32, #tpu.memory_space<vmem>>, vector<1x1x128xf32>,
    return
  }
  func.func @transform_0(%arg0: i32) -> (i32, i32) {
    %c0_i32 = arith.constant 0 : i32
    %c0_i32_0 = arith.constant 0 : i32
    return %arg0, %c0_i32 : i32, i32
  }
  func.func @transform_1(%arg0: i32) -> (i32, i32) {
    %c0_i32 = arith.constant 0 : i32
    %c0_i32_0 = arith.constant 0 : i32
    %c0_i32_1 = arith.constant 0 : i32
    return %c0_i32, %c0_i32_0 : i32, i32
  }
  func.func @transform_2(%arg0: i32) -> (i32, i32, i32) {
    %c0_i32 = arith.constant 0 : i32
    %c0_i32_0 = arith.constant 0 : i32
    %c0_i32_1 = arith.constant 0 : i32
    return %arg0, %c0_i32, %c0_i32_0 : i32, i32, i32
  }
  func.func @transform_3(%arg0: i32) -> (i32, i32, i32) {
    %c0_i32 = arith.constant 0 : i32
    %c0_i32_0 = arith.constant 0 : i32
    %c0_i32_1 = arith.constant 0 : i32
    return %arg0, %c0_i32, %c0_i32_0 : i32, i32, i32
  }
}

</mosaic_0001>

<llo_original>
// kernel: neuron_embedding_logreg.1
$region0: #{neuron_embedding_logreg.1}
  #allocation0 [shape = 'u32[]', space=smem, size = 0x4, offset = 0x4, fixed_abs, tag = 'smem constant byte address 0x4 - core index']
  #allocation1 [shape = 'u32[144,128]{1,0:T(1,128)}', space=vmem, size = 0x12000, scoped, tag = 'internal scratch']
  %s0 = inlined_call_operand.vmem [shape: f32[128,16], index: 0, kind: input, shape index: {}]
  %s1 = inlined_call_operand.vmem [shape: f32[1,16], index: 1, kind: input, shape index: {}]
  %s2 = inlined_call_operand.vmem [shape: f32[1,1,128], index: 2, kind: input, shape index: {}]
  %s3 = inlined_call_operand.vmem [shape: f32[1,1,128], index: 3, kind: output, shape index: {}]
  %s4 = sld [smem:[#allocation0]]
  $region22: #{neuron_embedding_logreg.1} parent=0
    _
  %s6 = ssub.s32 1, %s4
  %s7 = scalar_select 0, %s6, %s4
  // Predicated region
  $region2: #{neuron_embedding_logreg.1} parent=0 // pred_check
    _
  $region3: #{neuron_embedding_logreg.1} parent=0 // pred_check_branch
    %9 = sbr.rel (0) target = $region5
  $region4: #{neuron_embedding_logreg.1} parent=0 // pred_region
    _
  $region5: #{neuron_embedding_logreg.1} parent=0 // pred_fallthru
    _
  // Predicated region
  $region6: #{neuron_embedding_logreg.1} parent=0 // pred_check
    _
  $region7: #{neuron_embedding_logreg.1} parent=0 // pred_check_branch
    %11 = sbr.rel (0) target = $region9
  $region8: #{neuron_embedding_logreg.1} parent=0 // pred_region
    _
  $region9: #{neuron_embedding_logreg.1} parent=0 // pred_fallthru
    _
  // Predicated region
  $region10: #{neuron_embedding_logreg.1} parent=0 // pred_check
    _
  $region11: #{neuron_embedding_logreg.1} parent=0 // pred_check_branch
    %13 = sbr.rel (0) target = $region13
  $region12: #{neuron_embedding_logreg.1} parent=0 // pred_region
    _
  $region13: #{neuron_embedding_logreg.1} parent=0 // pred_fallthru
    _
  %v14 = vld [vmem:[%s0] sm:$0xff]
  %v15 = vld [vmem:[%s0 + $0x8] sm:$0xff]
  %v16 = vld [vmem:[%s0 + $0x10] sm:$0xff]
  %v17 = vld [vmem:[%s0 + $0x18] sm:$0xff]
  %v18 = vld [vmem:[%s0 + $0x20] sm:$0xff]
  %v19 = vld [vmem:[%s0 + $0x28] sm:$0xff]
  %v20 = vld [vmem:[%s0 + $0x30] sm:$0xff]
  %v21 = vld [vmem:[%s0 + $0x38] sm:$0xff]
  %v22 = vld [vmem:[%s0 + $0x40] sm:$0xff]
  %v23 = vld [vmem:[%s0 + $0x48] sm:$0xff]
  %v24 = vld [vmem:[%s0 + $0x50] sm:$0xff]
  %v25 = vld [vmem:[%s0 + $0x58] sm:$0xff]
  %v26 = vld [vmem:[%s0 + $0x60] sm:$0xff]
  %v27 = vld [vmem:[%s0 + $0x68] sm:$0xff]
  %v28 = vld [vmem:[%s0 + $0x70] sm:$0xff]
  %v29 = vld [vmem:[%s0 + $0x78] sm:$0xff]
  %v30 = vld [vmem:[%s1] sm:$0x1]
  %v32 = vlaneseq
  %v33 = vshrl.u32 %v32, 7
  %v34 = vsub.s32 0, %v33
  %v35 = vrot.slane %v30, %v34
  %v37 = vmul.f32 %v14, %v35
  %v38 = vmul.f32 %v15, %v35
  %v39 = vmul.f32 %v16, %v35
  %v40 = vmul.f32 %v17, %v35
  %v41 = vmul.f32 %v18, %v35
  %v42 = vmul.f32 %v19, %v35
  %v43 = vmul.f32 %v20, %v35
  %v44 = vmul.f32 %v21, %v35
  %v45 = vmul.f32 %v22, %v35
  %v46 = vmul.f32 %v23, %v35
  %v47 = vmul.f32 %v24, %v35
  %v48 = vmul.f32 %v25, %v35
  %v49 = vmul.f32 %v26, %v35
  %v50 = vmul.f32 %v27, %v35
  %v51 = vmul.f32 %v28, %v35
  %v52 = vmul.f32 %v29, %v35
  %vm53 = vcmask 130048
  %v54 = vsel %vm53, %v37, 0.0
  %55 = vadd.xlane.f32.xlu0 %v54
  %v56 = vpop.xlane.xlu0 %55
  %v57 = vsel %vm53, %v38, 0.0
  %58 = vadd.xlane.f32.xlu0 %v57
  %v59 = vpop.xlane.xlu0 %58
  %v60 = vsel %vm53, %v39, 0.0
  %61 = vadd.xlane.f32.xlu0 %v60
  %v62 = vpop.xlane.xlu0 %61
  %v63 = vsel %vm53, %v40, 0.0
  %64 = vadd.xlane.f32.xlu0 %v63
  %v65 = vpop.xlane.xlu0 %64
  %v66 = vsel %vm53, %v41, 0.0
  %67 = vadd.xlane.f32.xlu0 %v66
  %v68 = vpop.xlane.xlu0 %67
  %v69 = vsel %vm53, %v42, 0.0
  %70 = vadd.xlane.f32.xlu0 %v69
  %v71 = vpop.xlane.xlu0 %70
  %v72 = vsel %vm53, %v43, 0.0
  %73 = vadd.xlane.f32.xlu0 %v72
  %v74 = vpop.xlane.xlu0 %73
  %v75 = vsel %vm53, %v44, 0.0
  %76 = vadd.xlane.f32.xlu0 %v75
  %v77 = vpop.xlane.xlu0 %76
  %v78 = vsel %vm53, %v45, 0.0
  %79 = vadd.xlane.f32.xlu0 %v78
  %v80 = vpop.xlane.xlu0 %79
  %v81 = vsel %vm53, %v46, 0.0
  %82 = vadd.xlane.f32.xlu0 %v81
  %v83 = vpop.xlane.xlu0 %82
  %v84 = vsel %vm53, %v47, 0.0
  %85 = vadd.xlane.f32.xlu0 %v84
  %v86 = vpop.xlane.xlu0 %85
  %v87 = vsel %vm53, %v48, 0.0
  %88 = vadd.xlane.f32.xlu0 %v87
  %v89 = vpop.xlane.xlu0 %88
  %v90 = vsel %vm53, %v49, 0.0
  %91 = vadd.xlane.f32.xlu0 %v90
  %v92 = vpop.xlane.xlu0 %91
  %v93 = vsel %vm53, %v50, 0.0
  %94 = vadd.xlane.f32.xlu0 %v93
  %v95 = vpop.xlane.xlu0 %94
  %v96 = vsel %vm53, %v51, 0.0
  %97 = vadd.xlane.f32.xlu0 %v96
  %v98 = vpop.xlane.xlu0 %97
  %v99 = vsel %vm53, %v52, 0.0
  %100 = vadd.xlane.f32.xlu0 %v99
  %v101 = vpop.xlane.xlu0 %100
  %v102 = vld [vmem:[%s2] sm:$0x1]
  %v104 = vlaneseq
  %v105 = vshrl.u32 %v104, 7
  %v106 = vsub.s32 0, %v105
  %v107 = vrot.slane %v102, %v106
  %109 = vbcast.lane.b32.xlu0 %v107, 256
  %v110 = vpop.permute.xlu0 %109
  %s112 = sor.u32 256, 8
  %113 = vbcast.lane.b32.xlu0 %v107, %s112
  %v114 = vpop.permute.xlu0 %113
  %s116 = sor.u32 256, 16
  %117 = vbcast.lane.b32.xlu0 %v107, %s116
  %v118 = vpop.permute.xlu0 %117
  %s120 = sor.u32 256, 24
  %121 = vbcast.lane.b32.xlu0 %v107, %s120
  %v122 = vpop.permute.xlu0 %121
  %s124 = sor.u32 256, 32
  %125 = vbcast.lane.b32.xlu0 %v107, %s124
  %v126 = vpop.permute.xlu0 %125
  %s128 = sor.u32 256, 40
  %129 = vbcast.lane.b32.xlu0 %v107, %s128
  %v130 = vpop.permute.xlu0 %129
  %s132 = sor.u32 256, 48
  %133 = vbcast.lane.b32.xlu0 %v107, %s132
  %v134 = vpop.permute.xlu0 %133
  %s136 = sor.u32 256, 56
  %137 = vbcast.lane.b32.xlu0 %v107, %s136
  %v138 = vpop.permute.xlu0 %137
  %s140 = sor.u32 256, 64
  %141 = vbcast.lane.b32.xlu0 %v107, %s140
  %v142 = vpop.permute.xlu0 %141
  %s144 = sor.u32 256, 72
  %145 = vbcast.lane.b32.xlu0 %v107, %s144
  %v146 = vpop.permute.xlu0 %145
  %s148 = sor.u32 256, 80
  %149 = vbcast.lane.b32.xlu0 %v107, %s148
  %v150 = vpop.permute.xlu0 %149
  %s152 = sor.u32 256, 88
  %153 = vbcast.lane.b32.xlu0 %v107, %s152
  %v154 = vpop.permute.xlu0 %153
  %s156 = sor.u32 256, 96
  %157 = vbcast.lane.b32.xlu0 %v107, %s156
  %v158 = vpop.permute.xlu0 %157
  %s160 = sor.u32 256, 104
  %161 = vbcast.lane.b32.xlu0 %v107, %s160
  %v162 = vpop.permute.xlu0 %161
  %s164 = sor.u32 256, 112
  %165 = vbcast.lane.b32.xlu0 %v107, %s164
  %v166 = vpop.permute.xlu0 %165
  %s168 = sor.u32 256, 120
  %169 = vbcast.lane.b32.xlu0 %v107, %s168
  %v170 = vpop.permute.xlu0 %169
  %v187 = vadd.f32 %v56, %v110
  %v188 = vadd.f32 %v59, %v114
  %v189 = vadd.f32 %v62, %v118
  %v190 = vadd.f32 %v65, %v122
  %v191 = vadd.f32 %v68, %v126
  %v192 = vadd.f32 %v71, %v130
  %v193 = vadd.f32 %v74, %v134
  %v194 = vadd.f32 %v77, %v138
  %v195 = vadd.f32 %v80, %v142
  %v196 = vadd.f32 %v83, %v146
  %v197 = vadd.f32 %v86, %v150
  %v198 = vadd.f32 %v89, %v154
  %v199 = vadd.f32 %v92, %v158
  %v200 = vadd.f32 %v95, %v162
  %v201 = vadd.f32 %v98, %v166
  %v202 = vadd.f32 %v101, %v170
  %v203 = vxor.u32 %v187, 2147483648
  %v204 = vxor.u32 %v188, 2147483648
  %v205 = vxor.u32 %v189, 2147483648
  %v206 = vxor.u32 %v190, 2147483648
  %v207 = vxor.u32 %v191, 2147483648
  %v208 = vxor.u32 %v192, 2147483648
  %v209 = vxor.u32 %v193, 2147483648
  %v210 = vxor.u32 %v194, 2147483648
  %v211 = vxor.u32 %v195, 2147483648
  %v212 = vxor.u32 %v196, 2147483648
  %v213 = vxor.u32 %v197, 2147483648
  %v214 = vxor.u32 %v198, 2147483648
  %v215 = vxor.u32 %v199, 2147483648
  %v216 = vxor.u32 %v200, 2147483648
  %v217 = vxor.u32 %v201, 2147483648
  %v218 = vxor.u32 %v202, 2147483648
  %v219 = vmul.f32 %v203, 1.442695
  %v220 = vpow.pop %v219
  %v221 = vmul.f32 %v204, 1.442695
  %v222 = vpow.pop %v221
  %v223 = vmul.f32 %v205, 1.442695
  %v224 = vpow.pop %v223
  %v225 = vmul.f32 %v206, 1.442695
  %v226 = vpow.pop %v225
  %v227 = vmul.f32 %v207, 1.442695
  %v228 = vpow.pop %v227
  %v229 = vmul.f32 %v208, 1.442695
  %v230 = vpow.pop %v229
  %v231 = vmul.f32 %v209, 1.442695
  %v232 = vpow.pop %v231
  %v233 = vmul.f32 %v210, 1.442695
  %v234 = vpow.pop %v233
  %v235 = vmul.f32 %v211, 1.442695
  %v236 = vpow.pop %v235
  %v237 = vmul.f32 %v212, 1.442695
  %v238 = vpow.pop %v237
  %v239 = vmul.f32 %v213, 1.442695
  %v240 = vpow.pop %v239
  %v241 = vmul.f32 %v214, 1.442695
  %v242 = vpow.pop %v241
  %v243 = vmul.f32 %v215, 1.442695
  %v244 = vpow.pop %v243
  %v245 = vmul.f32 %v216, 1.442695
  %v246 = vpow.pop %v245
  %v247 = vmul.f32 %v217, 1.442695
  %v248 = vpow.pop %v247
  %v249 = vmul.f32 %v218, 1.442695
  %v250 = vpow.pop %v249
  %v251 = vadd.f32 %v220, 1.0
  %v252 = vadd.f32 %v222, 1.0
  %v253 = vadd.f32 %v224, 1.0
  %v254 = vadd.f32 %v226, 1.0
  %v255 = vadd.f32 %v228, 1.0
  %v256 = vadd.f32 %v230, 1.0
  %v257 = vadd.f32 %v232, 1.0
  %v258 = vadd.f32 %v234, 1.0
  %v259 = vadd.f32 %v236, 1.0
  %v260 = vadd.f32 %v238, 1.0
  %v261 = vadd.f32 %v240, 1.0
  %v262 = vadd.f32 %v242, 1.0
  %v263 = vadd.f32 %v244, 1.0
  %v264 = vadd.f32 %v246, 1.0
  %v265 = vadd.f32 %v248, 1.0
  %v266 = vadd.f32 %v250, 1.0
  %v267 = vrcp.pop %v251
  %v268 = vmul.f32 1.0, %v267
  %v269 = vrcp.pop %v252
  %v270 = vmul.f32 1.0, %v269
  %v271 = vrcp.pop %v253
  %v272 = vmul.f32 1.0, %v271
  %v273 = vrcp.pop %v254
  %v274 = vmul.f32 1.0, %v273
  %v275 = vrcp.pop %v255
  %v276 = vmul.f32 1.0, %v275
  %v277 = vrcp.pop %v256
  %v278 = vmul.f32 1.0, %v277
  %v279 = vrcp.pop %v257
  %v280 = vmul.f32 1.0, %v279
  %v281 = vrcp.pop %v258
  %v282 = vmul.f32 1.0, %v281
  %v283 = vrcp.pop %v259
  %v284 = vmul.f32 1.0, %v283
  %v285 = vrcp.pop %v260
  %v286 = vmul.f32 1.0, %v285
  %v287 = vrcp.pop %v261
  %v288 = vmul.f32 1.0, %v287
  %v289 = vrcp.pop %v262
  %v290 = vmul.f32 1.0, %v289
  %v291 = vrcp.pop %v263
  %v292 = vmul.f32 1.0, %v291
  %v293 = vrcp.pop %v264
  %v294 = vmul.f32 1.0, %v293
  %v295 = vrcp.pop %v265
  %v296 = vmul.f32 1.0, %v295
  %v297 = vrcp.pop %v266
  %v298 = vmul.f32 1.0, %v297
  %315 = vset.pattern.permute.xlu0 0
  %316 = vperm.xlu0 %315, %v268
  %v317 = vpop.permute.xlu0 %316
  %318 = vset.pattern.permute.xlu0 0
  %319 = vperm.xlu0 %318, %v270
  %v320 = vpop.permute.xlu0 %319
  %321 = vset.pattern.permute.xlu0 0
  %322 = vperm.xlu0 %321, %v272
  %v323 = vpop.permute.xlu0 %322
  %324 = vset.pattern.permute.xlu0 0
  %325 = vperm.xlu0 %324, %v274
  %v326 = vpop.permute.xlu0 %325
  %327 = vset.pattern.permute.xlu0 0
  %328 = vperm.xlu0 %327, %v276
  %v329 = vpop.permute.xlu0 %328
  %330 = vset.pattern.permute.xlu0 0
  %331 = vperm.xlu0 %330, %v278
  %v332 = vpop.permute.xlu0 %331
  %333 = vset.pattern.permute.xlu0 0
  %334 = vperm.xlu0 %333, %v280
  %v335 = vpop.permute.xlu0 %334
  %336 = vset.pattern.permute.xlu0 0
  %337 = vperm.xlu0 %336, %v282
  %v338 = vpop.permute.xlu0 %337
  %339 = vset.pattern.permute.xlu0 0
  %340 = vperm.xlu0 %339, %v284
  %v341 = vpop.permute.xlu0 %340
  %342 = vset.pattern.permute.xlu0 0
  %343 = vperm.xlu0 %342, %v286
  %v344 = vpop.permute.xlu0 %343
  %345 = vset.pattern.permute.xlu0 0
  %346 = vperm.xlu0 %345, %v288
  %v347 = vpop.permute.xlu0 %346
  %348 = vset.pattern.permute.xlu0 0
  %349 = vperm.xlu0 %348, %v290
  %v350 = vpop.permute.xlu0 %349
  %351 = vset.pattern.permute.xlu0 0
  %352 = vperm.xlu0 %351, %v292
  %v353 = vpop.permute.xlu0 %352
  %354 = vset.pattern.permute.xlu0 0
  %355 = vperm.xlu0 %354, %v294
  %v356 = vpop.permute.xlu0 %355
  %357 = vset.pattern.permute.xlu0 0
  %358 = vperm.xlu0 %357, %v296
  %v359 = vpop.permute.xlu0 %358
  %360 = vset.pattern.permute.xlu0 0
  %361 = vperm.xlu0 %360, %v298
  %v362 = vpop.permute.xlu0 %361
  %v363 = vlaneseq
  %v364 = vand.u32 %v363, 127
  %v365 = vlaneseq
  %v366 = vshrl.u32 %v365, 7
  %v367 = vsub.s32 %v364, %v366
  %v368 = vrot.slane %v317, %v367
  %v369 = vadd.s32 %v364, 4294967288
  %v370 = vlaneseq
  %v371 = vshrl.u32 %v370, 7
  %v372 = vsub.s32 %v369, %v371
  %v373 = vrot.slane %v320, %v372
  %vm374 = vcmask 130112
  %v375 = vsel %vm374, %v373, %v368
  %v376 = vadd.s32 %v364, 4294967280
  %v377 = vlaneseq
  %v378 = vshrl.u32 %v377, 7
  %v379 = vsub.s32 %v376, %v378
  %v380 = vrot.slane %v323, %v379
  %vm381 = vcmask 195712
  %v382 = vsel %vm381, %v380, %v375
  %v383 = vadd.s32 %v364, 4294967272
  %v384 = vlaneseq
  %v385 = vshrl.u32 %v384, 7
  %v386 = vsub.s32 %v383, %v385
  %v387 = vrot.slane %v326, %v386
  %vm388 = vcmask 261312
  %v389 = vsel %vm388, %v387, %v382
  %v390 = vadd.s32 %v364, 4294967264
  %v391 = vlaneseq
  %v392 = vshrl.u32 %v391, 7
  %v393 = vsub.s32 %v390, %v392
  %v394 = vrot.slane %v329, %v393
  %vm395 = vcmask 326912
  %v396 = vsel %vm395, %v394, %v389
  %v397 = vadd.s32 %v364, 4294967256
  %v398 = vlaneseq
  %v399 = vshrl.u32 %v398, 7
  %v400 = vsub.s32 %v397, %v399
  %v401 = vrot.slane %v332, %v400
  %vm402 = vcmask 392512
  %v403 = vsel %vm402, %v401, %v396
  %v404 = vadd.s32 %v364, 4294967248
  %v405 = vlaneseq
  %v406 = vshrl.u32 %v405, 7
  %v407 = vsub.s32 %v404, %v406
  %v408 = vrot.slane %v335, %v407
  %vm409 = vcmask 458112
  %v410 = vsel %vm409, %v408, %v403
  %v411 = vadd.s32 %v364, 4294967240
  %v412 = vlaneseq
  %v413 = vshrl.u32 %v412, 7
  %v414 = vsub.s32 %v411, %v413
  %v415 = vrot.slane %v338, %v414
  %vm416 = vcmask 523712
  %v417 = vsel %vm416, %v415, %v410
  %v418 = vadd.s32 %v364, 4294967232
  %v419 = vlaneseq
  %v420 = vshrl.u32 %v419, 7
  %v421 = vsub.s32 %v418, %v420
  %v422 = vrot.slane %v341, %v421
  %vm423 = vcmask 589312
  %v424 = vsel %vm423, %v422, %v417
  %v425 = vadd.s32 %v364, 4294967224
  %v426 = vlaneseq
  %v427 = vshrl.u32 %v426, 7
  %v428 = vsub.s32 %v425, %v427
  %v429 = vrot.slane %v344, %v428
  %vm430 = vcmask 654912
  %v431 = vsel %vm430, %v429, %v424
  %v432 = vadd.s32 %v364, 4294967216
  %v433 = vlaneseq
  %v434 = vshrl.u32 %v433, 7
  %v435 = vsub.s32 %v432, %v434
  %v436 = vrot.slane %v347, %v435
  %vm437 = vcmask 720512
  %v438 = vsel %vm437, %v436, %v431
  %v439 = vadd.s32 %v364, 4294967208
  %v440 = vlaneseq
  %v441 = vshrl.u32 %v440, 7
  %v442 = vsub.s32 %v439, %v441
  %v443 = vrot.slane %v350, %v442
  %vm444 = vcmask 786112
  %v445 = vsel %vm444, %v443, %v438
  %v446 = vadd.s32 %v364, 4294967200
  %v447 = vlaneseq
  %v448 = vshrl.u32 %v447, 7
  %v449 = vsub.s32 %v446, %v448
  %v450 = vrot.slane %v353, %v449
  %vm451 = vcmask 851712
  %v452 = vsel %vm451, %v450, %v445
  %v453 = vadd.s32 %v364, 4294967192
  %v454 = vlaneseq
  %v455 = vshrl.u32 %v454, 7
  %v456 = vsub.s32 %v453, %v455
  %v457 = vrot.slane %v356, %v456
  %vm458 = vcmask 917312
  %v459 = vsel %vm458, %v457, %v452
  %v460 = vadd.s32 %v364, 4294967184
  %v461 = vlaneseq
  %v462 = vshrl.u32 %v461, 7
  %v463 = vsub.s32 %v460, %v462
  %v464 = vrot.slane %v359, %v463
  %vm465 = vcmask 982912
  %v466 = vsel %vm465, %v464, %v459
  %v467 = vadd.s32 %v364, 4294967176
  %v468 = vlaneseq
  %v469 = vshrl.u32 %v468, 7
  %v470 = vsub.s32 %v467, %v469
  %v471 = vrot.slane %v362, %v470
  %vm472 = vcmask 1048512
  %v473 = vsel %vm472, %v471, %v466
  %475 = vst [vmem:[%s3] sm:$0x1] %v473
  // Predicated region
  $region14: #{neuron_embedding_logreg.1} parent=0 // pred_check
    _
  $region15: #{neuron_embedding_logreg.1} parent=0 // pred_check_branch
    %477 = sbr.rel (0) target = $region17
  $region16: #{neuron_embedding_logreg.1} parent=0 // pred_region
    _
  $region17: #{neuron_embedding_logreg.1} parent=0 // pred_fallthru
    _
  // Predicated region
  $region18: #{neuron_embedding_logreg.1} parent=0 // pred_check
    _
  $region19: #{neuron_embedding_logreg.1} parent=0 // pred_check_branch
    %479 = sbr.rel (0) target = $region21
  $region20: #{neuron_embedding_logreg.1} parent=0 // pred_region
    _
  $region21: #{neuron_embedding_logreg.1} parent=0 // pred_fallthru
    _

</llo_original>
